<compile_context>
chip_gen: v5e
topology: v5e:2x2
jax: 0.10.0
libtpu: 0.0.40
codegen_flags: <defaults>
</compile_context>

<pallas_src>
import functools
import types

import jax
import jax.numpy as jnp
from jax.experimental import pallas as pl
from jax.experimental.pallas import tpu as pltpu

LN_EPS = 1e-5  # PyTorch nn.LayerNorm default


def _round_up(n, m):
    return ((n + m - 1) // m) * m


def _vmem_capacity_bytes():
    """Physical per-core VMEM; conservative 64 MiB fallback if the query fails."""
    try:
        info = pltpu.get_tpu_info()
        cap = getattr(info, "vmem_capacity_bytes", None)
        if cap:
            return int(cap)
    except Exception:
        pass
    return 64 << 20


def mlp_kernel(x_ref, w1_ref, w2_ref, w3_ref, vec_ref, b3_ref, o_ref,
               *, f_hidden: int, skip_connection: bool):
    """One batch tile of the fused MLP.

    x_ref:   [tm, Fi]   (input dtype)
    w*_ref:  bf16 weights, feature dims padded to multiples of 128
    vec_ref: [6, Hp] f32 rows = (b1, g1, be1, b2, g2, be2)
    b3_ref:  [1, Fo] f32
    """
    x_bf = x_ref[...].astype(jnp.bfloat16)

    inv_n = jnp.float32(1.0 / f_hidden)
    b1 = vec_ref[0:1, :]
    g1 = vec_ref[1:2, :]
    be1 = vec_ref[2:3, :]
    b2 = vec_ref[3:4, :]
    g2 = vec_ref[4:5, :]
    be2 = vec_ref[5:6, :]

    def ln_silu(h, gamma, beta):
        # Two-moment LayerNorm over the true f_hidden lanes.  Padded lanes of h are
        # exactly zero (zero-padded weights/biases), so plain sums divided by the real
        # f_hidden are correct; padded gamma/beta are zero, so padded lanes of y (and
        # SiLU(y)) stay zero for the next matmul.  All math in f32.
        mu = jnp.sum(h, axis=-1, keepdims=True) * inv_n
        m2 = jnp.sum(h * h, axis=-1, keepdims=True) * inv_n
        var = jnp.maximum(m2 - mu * mu, 0.0)
        y = (h - mu) * jax.lax.rsqrt(var + LN_EPS) * gamma + beta
        # SiLU; the exp and the reciprocal both land on the EUP slot (not VALU).
        return y * pl.reciprocal(1.0 + jnp.exp(-y), approx=True)

    # Linear 1 (bf16 MXU operands, f32 accumulate) + LN1 + SiLU
    h = jnp.dot(x_bf, w1_ref[...], preferred_element_type=jnp.float32) + b1
    h = ln_silu(h, g1, be1)

    # Linear 2 + LN2 + SiLU
    h = jnp.dot(h.astype(jnp.bfloat16), w2_ref[...],
                preferred_element_type=jnp.float32) + b2
    h = ln_silu(h, g2, be2)

    # Linear 3
    out = jnp.dot(h.astype(jnp.bfloat16), w3_ref[...],
                  preferred_element_type=jnp.float32) + b3_ref[...]

    if skip_connection:  # requires f_in == f_out; x tile is still resident in VMEM.
        out = out + x_ref[...].astype(jnp.float32)

    o_ref[...] = out.astype(o_ref.dtype)


def mlp_forward(x, params, *, skip_connection=False):
    """x: [B, f_in]; params: dict of [in, out] weights and (1, n) vectors."""
    B, f_in = x.shape
    f_hidden = params["w1"].shape[1]
    f_out = params["w3"].shape[1]
    if skip_connection and f_in != f_out:
        raise ValueError("skip_connection requires f_in == f_out")

    # Lane-dense padded feature dims.
    Fi = _round_up(f_in, 128)
    Hp = _round_up(f_hidden, 128)
    Fo = _round_up(f_out, 128)

    itm_in = jnp.dtype(x.dtype).itemsize
    itm_out = itm_in

    # ---- generation-aware tile / VMEM budgeting ---------------------------------
    cap = _vmem_capacity_bytes()
    budget = max(cap - (12 << 20), 24 << 20)      # leave headroom for compiler scratch
    budget = min(budget, cap)

    weights_bytes = (Fi * Hp + Hp * Hp + Hp * Fo) * 2 + (6 * Hp + Fo) * 4

    def footprint(tm):
        return (2 * tm * Fi * itm_in               # x tiles (double-buffered)
                + 2 * tm * Fo * itm_out            # out tiles (double-buffered)
                + weights_bytes                    # single-buffered weights + vecs
                + 3 * tm * Hp * 4                  # live f32 hidden intermediates
                + 2 * tm * Hp * 2                  # bf16 activation copies for dot2/3
                + tm * Fo * 4                      # f32 output before cast
                + (tm * Fi * 4 if skip_connection else 0))

    tm_cap = 512 if cap <= (64 << 20) else 2048    # v7x vs v5e/v6e
    tm_cap = min(tm_cap, _round_up(B, 8))
    candidates = [c for c in (2048, 1024, 512, 256, 128, 64, 32, 16, 8) if c <= tm_cap]
    if not candidates:
        candidates = [_round_up(B, 8)]
    tm = candidates[-1]
    for c in candidates:                            # largest tile that fits the budget
        if footprint(c) <= budget:
            tm = c
            break
    # TODO(synk): if footprint(candidates[-1]) > budget (huge f_hidden), switch to the
    # hidden-dim-blocked accumulator path instead of relying on the smallest tile.

    Bp = _round_up(B, tm)

    # ---- operand preparation -----------------------------------------------------
    xp = jnp.pad(x, ((0, Bp - B), (0, Fi - f_in)))

    def pad2(a, rows, cols):
        return jnp.pad(a, ((0, rows - a.shape[0]), (0, cols - a.shape[1])))

    # bf16 weights (MXU operands); zero padding keeps padded lanes exactly zero.
    w1 = pad2(params["w1"], Fi, Hp).astype(jnp.bfloat16)
    w2 = pad2(params["w2"], Hp, Hp).astype(jnp.bfloat16)
    w3 = pad2(params["w3"], Hp, Fo).astype(jnp.bfloat16)

    # Pack the six (1, f_hidden) vectors into one [6, Hp] f32 array (one DMA).
    vecs = jnp.concatenate(
        [pad2(params["b1"], 1, Hp), pad2(params["g1"], 1, Hp), pad2(params["be1"], 1, Hp),
         pad2(params["b2"], 1, Hp), pad2(params["g2"], 1, Hp), pad2(params["be2"], 1, Hp)],
        axis=0).astype(jnp.float32)
    b3 = pad2(params["b3"], 1, Fo).astype(jnp.float32)

    def const_spec(a):  # grid-invariant operand: single-buffered
        return pl.BlockSpec(a.shape, lambda i: (0, 0), pipeline_mode=pl.Buffered(1))

    grid_spec = pltpu.PrefetchScalarGridSpec(
        num_scalar_prefetch=0,
        grid=(Bp // tm,),
        in_specs=[
            pl.BlockSpec((tm, Fi), lambda i: (i, 0)),   # x tile
            const_spec(w1), const_spec(w2), const_spec(w3),
            const_spec(vecs), const_spec(b3),
        ],
        out_specs=pl.BlockSpec((tm, Fo), lambda i: (i, 0)),
    )

    # Advisory cost estimate so XLA schedules the surrounding pad/cast/slice sensibly.
    flops = 2 * Bp * (Fi * Hp + Hp * Hp + Hp * Fo)
    transcendentals = 4 * Bp * Hp                      # exp + reciprocal per SiLU
    bytes_accessed = (Bp * Fi * itm_in + Bp * Fo * itm_out + weights_bytes)

    kernel = functools.partial(mlp_kernel, f_hidden=f_hidden,
                               skip_connection=skip_connection)
    out = pl.pallas_call(
        kernel,
        out_shape=jax.ShapeDtypeStruct((Bp, Fo), x.dtype),
        grid_spec=grid_spec,
        compiler_params=pltpu.CompilerParams(
            dimension_semantics=("parallel",),
            vmem_limit_bytes=int(budget),
            # let XLA fuse the wrapper-side pad of x into this kernel's input DMA
            allow_input_fusion=[True, False, False, False, False, False]),
        cost_estimate=pl.CostEstimate(flops=int(flops),
                                      transcendentals=int(transcendentals),
                                      bytes_accessed=int(bytes_accessed)),
    )(xp, w1, w2, w3, vecs, b3)

    return out[:B, :f_out]


def combine_invariant_features_forward(batch, params):
    """CombineInvariantFeatures.forward: MLP(n_in, n_out, n_out), no skip connection."""
    batch.invariant_node_features = mlp_forward(
        batch.invariant_node_features, params, skip_connection=False)
    return batch


def init_params(key, f_in, f_hidden, f_out, dtype=jnp.float32):
    """Deterministic synthetic init. Linear weights stored as [in, out]."""
    ks = jax.random.split(key, 6)

    def lin(kw, kb, fan_in, fan_out):
        bound = 1.0 / jnp.sqrt(fan_in)
        w = jax.random.uniform(kw, (fan_in, fan_out), dtype, -bound, bound)
        b = jax.random.uniform(kb, (1, fan_out), dtype, -bound, bound)
        return w, b

    w1, b1 = lin(ks[0], ks[1], f_in, f_hidden)
    w2, b2 = lin(ks[2], ks[3], f_hidden, f_hidden)
    w3, b3 = lin(ks[4], ks[5], f_hidden, f_out)
    ones = lambda n: jnp.ones((1, n), dtype)
    zeros = lambda n: jnp.zeros((1, n), dtype)
    return dict(w1=w1, b1=b1, g1=ones(f_hidden), be1=zeros(f_hidden),
                w2=w2, b2=b2, g2=ones(f_hidden), be2=zeros(f_hidden),
                w3=w3, b3=b3)


def mlp_reference(x, p, skip_connection=False):
    """Pure-JAX reference mirroring the kernel's bf16-operand / f32-accumulate dots."""
    def dot(a, w):
        return jnp.dot(a.astype(jnp.bfloat16), w.astype(jnp.bfloat16),
                       preferred_element_type=jnp.float32)

    def ln(h, g, b):
        mu = h.mean(-1, keepdims=True)
        xc = h - mu
        var = (xc * xc).mean(-1, keepdims=True)
        return xc * jax.lax.rsqrt(var + LN_EPS) * g + b

    silu = lambda h: h * jax.nn.sigmoid(h)
    h = silu(ln(dot(x, p["w1"]) + p["b1"], p["g1"], p["be1"]))
    h = silu(ln(dot(h, p["w2"]) + p["b2"], p["g2"], p["be2"]))
    out = dot(h, p["w3"]) + p["b3"]
    return x + out if skip_connection else out


if __name__ == "__main__":
    key = jax.random.PRNGKey(0)
    k_x, k_p = jax.random.split(key)

    # CombineInvariantFeatures(n_features_in, n_features_out):
    #   MLP(f_in=n_features_in, f_hidden=n_features_out, f_out=n_features_out)
    n_nodes, n_features_in, n_features_out = 12, 24, 40

    params = init_params(k_p, n_features_in, n_features_out, n_features_out)
    feats = jax.random.normal(k_x, (n_nodes, n_features_in), jnp.float32)

    batch = types.SimpleNamespace(invariant_node_features=feats)
    batch = combine_invariant_features_forward(batch, params)
    out = jax.block_until_ready(batch.invariant_node_features)

    ref = mlp_reference(feats, params, skip_connection=False)
    assert out.shape == (n_nodes, n_features_out)
    assert jnp.allclose(out, ref, atol=2e-2, rtol=2e-2), "mismatch vs reference"

    print("KERNEL_OK")
</pallas_src>

<mosaic_0001>
module attributes {stable_mosaic.version = 11 : i64} {
  func.func @mlp_kernel(%arg0: i32, %arg1: memref<16x128xf32, #tpu.memory_space<vmem>>, %arg2: memref<128x128xbf16, #tpu.memory_space<vmem>>, %arg3: memref<128x128xbf16, #tpu.memory_space<vmem>>, %arg4: memref<128x128xbf16, #tpu.memory_space<vmem>>, %arg5: memref<6x128xf32, #tpu.memory_space<vmem>>, %arg6: memref<1x128xf32, #tpu.memory_space<vmem>>, %arg7: memref<16x128xf32, #tpu.memory_space<vmem>>) attributes {dimension_semantics = [#tpu.dimension_semantics<parallel>], iteration_bounds = array<i64: 1>, scalar_prefetch = 0 : i64, scratch_operands = 0 : i64, tpu.core_type = #tpu.core_type<tc>, window_params = [{transform_indices = @transform_0, window_bounds = array<i64: 16, 128>}, {pipeline_mode = #tpu.pipeline_mode<synchronous>, transform_indices = @transform_1, window_bounds = array<i64: 128, 128>}, {pipeline_mode = #tpu.pipeline_mode<synchronous>, transform_indices = @transform_2, window_bounds = array<i64: 128, 128>}, {pipeline_mode = #tpu.pipeline_mode<synchronous>, transform_indices = @transform_3, window_bounds = array<i64: 128, 128>}, {pipeline_mode = #tpu.pipeline_mode<synchronous>, transform_indices = @transform_4, window_bounds = array<i64: 6, 128>}, {pipeline_mode = #tpu.pipeline_mode<synchronous>, transform_indices = @transform_5, window_bounds = array<i64: 1, 128>}, {transform_indices = @transform_6, window_bounds = array<i64: 16, 128>}]} {
    %c0 = arith.constant 0 : index
    %c0_0 = arith.constant 0 : index
    %0 = vector.load %arg1[%c0, %c0_0] : memref<16x128xf32, #tpu.memory_space<vmem>>, vector<16x128xf32>
    %1 = arith.truncf %0 : vector<16x128xf32> to vector<16x128xbf16>
    %c0_1 = arith.constant 0 : index
    %c0_2 = arith.constant 0 : index
    %2 = vector.load %arg5[%c0_1, %c0_2] : memref<6x128xf32, #tpu.memory_space<vmem>>, vector<1x128xf32>
    %c1 = arith.constant 1 : index
    %c0_3 = arith.constant 0 : index
    %3 = vector.load %arg5[%c1, %c0_3] : memref<6x128xf32, #tpu.memory_space<vmem>>, vector<1x128xf32>
    %c2 = arith.constant 2 : index
    %c0_4 = arith.constant 0 : index
    %4 = vector.load %arg5[%c2, %c0_4] : memref<6x128xf32, #tpu.memory_space<vmem>>, vector<1x128xf32>
    %c3 = arith.constant 3 : index
    %c0_5 = arith.constant 0 : index
    %5 = vector.load %arg5[%c3, %c0_5] : memref<6x128xf32, #tpu.memory_space<vmem>>, vector<1x128xf32>
    %c4 = arith.constant 4 : index
    %c0_6 = arith.constant 0 : index
    %6 = vector.load %arg5[%c4, %c0_6] : memref<6x128xf32, #tpu.memory_space<vmem>>, vector<1x128xf32>
    %c5 = arith.constant 5 : index
    %c0_7 = arith.constant 0 : index
    %7 = vector.load %arg5[%c5, %c0_7] : memref<6x128xf32, #tpu.memory_space<vmem>>, vector<1x128xf32>
    %c0_8 = arith.constant 0 : index
    %c0_9 = arith.constant 0 : index
    %8 = vector.load %arg2[%c0_8, %c0_9] : memref<128x128xbf16, #tpu.memory_space<vmem>>, vector<128x128xbf16>
    %cst = arith.constant dense<0.000000e+00> : vector<16x128xf32>
    %9 = tpu.matmul %1, %8, %cst {dimension_numbers = #tpu.dot_dimension_numbers<[1], [0], [0], [1], [0, 0, 1, 1], [], []>} : vector<16x128xbf16>, vector<128x128xbf16>, vector<16x128xf32> -> vector<16x128xf32>
    %10 = vector.broadcast %2 : vector<1x128xf32> to vector<16x128xf32>
    %11 = arith.addf %9, %10 : vector<16x128xf32>
    %cst_10 = arith.constant dense<0.000000e+00> : vector<16xf32>
    %12 = vector.multi_reduction <add>, %11, %cst_10 [1] : vector<16x128xf32> to vector<16xf32>
    %13 = vector.shape_cast %12 : vector<16xf32> to vector<16x1xf32>
    %cst_11 = arith.constant 2.500000e-02 : f32
    %14 = vector.broadcast %cst_11 : f32 to vector<16x1xf32>
    %15 = arith.mulf %13, %14 : vector<16x1xf32>
    %16 = arith.mulf %11, %11 : vector<16x128xf32>
    %cst_12 = arith.constant dense<0.000000e+00> : vector<16xf32>
    %17 = vector.multi_reduction <add>, %16, %cst_12 [1] : vector<16x128xf32> to vector<16xf32>
    %18 = vector.shape_cast %17 : vector<16xf32> to vector<16x1xf32>
    %cst_13 = arith.constant 2.500000e-02 : f32
    %19 = vector.broadcast %cst_13 : f32 to vector<16x1xf32>
    %20 = arith.mulf %18, %19 : vector<16x1xf32>
    %21 = arith.mulf %15, %15 : vector<16x1xf32>
    %22 = arith.subf %20, %21 : vector<16x1xf32>
    %cst_14 = arith.constant 0.000000e+00 : f32
    %23 = vector.broadcast %cst_14 : f32 to vector<16x1xf32>
    %24 = arith.maximumf %22, %23 : vector<16x1xf32>
    %25 = vector.broadcast %15 : vector<16x1xf32> to vector<16x128xf32>
    %26 = arith.subf %11, %25 : vector<16x128xf32>
    %cst_15 = arith.constant 9.99999974E-6 : f32
    %27 = vector.broadcast %cst_15 : f32 to vector<16x1xf32>
    %28 = arith.addf %24, %27 : vector<16x1xf32>
    %29 = math.rsqrt %28 : vector<16x1xf32>
    %30 = vector.broadcast %29 : vector<16x1xf32> to vector<16x128xf32>
    %31 = arith.mulf %26, %30 : vector<16x128xf32>
    %32 = vector.broadcast %3 : vector<1x128xf32> to vector<16x128xf32>
    %33 = arith.mulf %31, %32 : vector<16x128xf32>
    %34 = vector.broadcast %4 : vector<1x128xf32> to vector<16x128xf32>
    %35 = arith.addf %33, %34 : vector<16x128xf32>
    %cst_16 = arith.constant 0.000000e+00 : f32
    %36 = vector.broadcast %cst_16 : f32 to vector<16x128xf32>
    %37 = arith.subf %36, %35 : vector<16x128xf32>
    %38 = math.exp %37 : vector<16x128xf32>
    %cst_17 = arith.constant 1.000000e+00 : f32
    %39 = vector.broadcast %cst_17 : f32 to vector<16x128xf32>
    %40 = arith.addf %39, %38 : vector<16x128xf32>
    %41 = tpu.reciprocal %40 {approx = true} : vector<16x128xf32> -> vector<16x128xf32>
    %42 = arith.mulf %35, %41 : vector<16x128xf32>
    %43 = arith.truncf %42 : vector<16x128xf32> to vector<16x128xbf16>
    %c0_18 = arith.constant 0 : index
    %c0_19 = arith.constant 0 : index
    %44 = vector.load %arg3[%c0_18, %c0_19] : memref<128x128xbf16, #tpu.memory_space<vmem>>, vector<128x128xbf16>
    %cst_20 = arith.constant dense<0.000000e+00> : vector<16x128xf32>
    %45 = tpu.matmul %43, %44, %cst_20 {dimension_numbers = #tpu.dot_dimension_numbers<[1], [0], [0], [1], [0, 0, 1, 1], [], []>} : vector<16x128xbf16>, vector<128x128xbf16>, vector<16x128xf32> -> vector<16x128xf32>
    %46 = vector.broadcast %5 : vector<1x128xf32> to vector<16x128xf32>
    %47 = arith.addf %45, %46 : vector<16x128xf32>
    %cst_21 = arith.constant dense<0.000000e+00> : vector<16xf32>
    %48 = vector.multi_reduction <add>, %47, %cst_21 [1] : vector<16x128xf32> to vector<16xf32>
    %49 = vector.shape_cast %48 : vector<16xf32> to vector<16x1xf32>
    %cst_22 = arith.constant 2.500000e-02 : f32
    %50 = vector.broadcast %cst_22 : f32 to vector<16x1xf32>
    %51 = arith.mulf %49, %50 : vector<16x1xf32>
    %52 = arith.mulf %47, %47 : vector<16x128xf32>
    %cst_23 = arith.constant dense<0.000000e+00> : vector<16xf32>
    %53 = vector.multi_reduction <add>, %52, %cst_23 [1] : vector<16x128xf32> to vector<16xf32>
    %54 = vector.shape_cast %53 : vector<16xf32> to vector<16x1xf32>
    %cst_24 = arith.constant 2.500000e-02 : f32
    %55 = vector.broadcast %cst_24 : f32 to vector<16x1xf32>
    %56 = arith.mulf %54, %55 : vector<16x1xf32>
    %57 = arith.mulf %51, %51 : vector<16x1xf32>
    %58 = arith.subf %56, %57 : vector<16x1xf32>
    %cst_25 = arith.constant 0.000000e+00 : f32
    %59 = vector.broadcast %cst_25 : f32 to vector<16x1xf32>
    %60 = arith.maximumf %58, %59 : vector<16x1xf32>
    %61 = vector.broadcast %51 : vector<16x1xf32> to vector<16x128xf32>
    %62 = arith.subf %47, %61 : vector<16x128xf32>
    %cst_26 = arith.constant 9.99999974E-6 : f32
    %63 = vector.broadcast %cst_26 : f32 to vector<16x1xf32>
    %64 = arith.addf %60, %63 : vector<16x1xf32>
    %65 = math.rsqrt %64 : vector<16x1xf32>
    %66 = vector.broadcast %65 : vector<16x1xf32> to vector<16x128xf32>
    %67 = arith.mulf %62, %66 : vector<16x128xf32>
    %68 = vector.broadcast %6 : vector<1x128xf32> to vector<16x128xf32>
    %69 = arith.mulf %67, %68 : vector<16x128xf32>
    %70 = vector.broadcast %7 : vector<1x128xf32> to vector<16x128xf32>
    %71 = arith.addf %69, %70 : vector<16x128xf32>
    %cst_27 = arith.constant 0.000000e+00 : f32
    %72 = vector.broadcast %cst_27 : f32 to vector<16x128xf32>
    %73 = arith.subf %72, %71 : vector<16x128xf32>
    %74 = math.exp %73 : vector<16x128xf32>
    %cst_28 = arith.constant 1.000000e+00 : f32
    %75 = vector.broadcast %cst_28 : f32 to vector<16x128xf32>
    %76 = arith.addf %75, %74 : vector<16x128xf32>
    %77 = tpu.reciprocal %76 {approx = true} : vector<16x128xf32> -> vector<16x128xf32>
    %78 = arith.mulf %71, %77 : vector<16x128xf32>
    %79 = arith.truncf %78 : vector<16x128xf32> to vector<16x128xbf16>
    %c0_29 = arith.constant 0 : index
    %c0_30 = arith.constant 0 : index
    %80 = vector.load %arg4[%c0_29, %c0_30] : memref<128x128xbf16, #tpu.memory_space<vmem>>, vector<128x128xbf16>
    %cst_31 = arith.constant dense<0.000000e+00> : vector<16x128xf32>
    %81 = tpu.matmul %79, %80, %cst_31 {dimension_numbers = #tpu.dot_dimension_numbers<[1], [0], [0], [1], [0, 0, 1, 1], [], []>} : vector<16x128xbf16>, vector<128x128xbf16>, vector<16x128xf32> -> vector<16x128xf32>
    %c0_32 = arith.constant 0 : index
    %c0_33 = arith.constant 0 : index
    %82 = vector.load %arg6[%c0_32, %c0_33] : memref<1x128xf32, #tpu.memory_space<vmem>>, vector<1x128xf32>
    %83 = vector.broadcast %82 : vector<1x128xf32> to vector<16x128xf32>
    %84 = arith.addf %81, %83 : vector<16x128xf32>
    %c0_34 = arith.constant 0 : index
    %c0_35 = arith.constant 0 : index
    %85 = vector.load %arg7[%c0_34, %c0_35] : memref<16x128xf32, #tpu.memory_space<vmem>>, vector<16x128xf32>
    tpu.vector_store %arg7[%c0_34, %c0_35], %84 {strides = array<i32>} : memref<16x128xf32, #tpu.memory_space<vmem>>, vector<16x128xf32>,
    return
  }
  func.func @transform_0(%arg0: i32) -> (i32, i32) {
    %c0_i32 = arith.constant 0 : i32
    %c0_i32_0 = arith.constant 0 : i32
    return %arg0, %c0_i32 : i32, i32
  }
  func.func @transform_1(%arg0: i32) -> (i32, i32) {
    %c0_i32 = arith.constant 0 : i32
    %c0_i32_0 = arith.constant 0 : i32
    %c0_i32_1 = arith.constant 0 : i32
    return %c0_i32, %c0_i32_0 : i32, i32
  }
  func.func @transform_2(%arg0: i32) -> (i32, i32) {
    %c0_i32 = arith.constant 0 : i32
    %c0_i32_0 = arith.constant 0 : i32
    %c0_i32_1 = arith.constant 0 : i32
    return %c0_i32, %c0_i32_0 : i32, i32
  }
  func.func @transform_3(%arg0: i32) -> (i32, i32) {
    %c0_i32 = arith.constant 0 : i32
    %c0_i32_0 = arith.constant 0 : i32
    %c0_i32_1 = arith.constant 0 : i32
    return %c0_i32, %c0_i32_0 : i32, i32
  }
  func.func @transform_4(%arg0: i32) -> (i32, i32) {
    %c0_i32 = arith.constant 0 : i32
    %c0_i32_0 = arith.constant 0 : i32
    %c0_i32_1 = arith.constant 0 : i32
    return %c0_i32, %c0_i32_0 : i32, i32
  }
  func.func @transform_5(%arg0: i32) -> (i32, i32) {
    %c0_i32 = arith.constant 0 : i32
    %c0_i32_0 = arith.constant 0 : i32
    %c0_i32_1 = arith.constant 0 : i32
    return %c0_i32, %c0_i32_0 : i32, i32
  }
  func.func @transform_6(%arg0: i32) -> (i32, i32) {
    %c0_i32 = arith.constant 0 : i32
    %c0_i32_0 = arith.constant 0 : i32
    return %arg0, %c0_i32 : i32, i32
  }
}

</mosaic_0001>

<llo_original>
// kernel: tpu_custom_call.1
$region0: #{tpu_custom_call.1}
  #allocation0 [shape = 'u32[]', space=smem, size = 0x4, offset = 0x4, fixed_abs, tag = 'smem constant byte address 0x4 - core index']
  #allocation1 [shape = 'u32[72,128]{1,0:T(1,128)}', space=vmem, size = 0x9000, scoped, tag = 'internal scratch']
  %s0 = inlined_call_operand.hbm [shape: f32[16,128], index: 0, kind: input, shape index: {}]
  %s1 = inlined_call_operand.hbm [shape: bf16[128,128], index: 1, kind: input, shape index: {}]
  %s2 = inlined_call_operand.hbm [shape: bf16[128,128], index: 2, kind: input, shape index: {}]
  %s3 = inlined_call_operand.hbm [shape: bf16[128,128], index: 3, kind: input, shape index: {}]
  %s4 = inlined_call_operand.hbm [shape: f32[6,128], index: 4, kind: input, shape index: {}]
  %s5 = inlined_call_operand.vmem [shape: f32[1,128], index: 5, kind: input, shape index: {}]
  %s6 = inlined_call_operand.hbm [shape: f32[16,128], index: 6, kind: output, shape index: {}]
  %s7 = sld [smem:[#allocation0]]
  $region54: #{tpu_custom_call.1} parent=0
    _
  %s9 = ssub.s32 1, %s7
  %s10 = scalar_select 0, %s9, %s7
  $region1: #{tpu_custom_call.1} parent=0
    #allocation2 [shape = 'u8[8192]{0}', space=vmem, size = 0x2000, scoped, tag = 'input window, operand 0, single buffered']
    #allocation3 [shape = 's32[1]{0}', space=sflag, size = 0x4, scoped, tag = 'scoped memory for tpu_custom_call.1']
    #allocation4 [shape = 's32[1]{0}', space=sflag, size = 0x4, scoped, tag = 'scoped memory for tpu_custom_call.1']
    #allocation5 [shape = 'u8[32768]{0}', space=vmem, size = 0x8000, scoped, tag = 'input window, operand 1, single buffered']
    #allocation6 [shape = 's32[1]{0}', space=sflag, size = 0x4, scoped, tag = 'scoped memory for tpu_custom_call.1']
    #allocation7 [shape = 'u8[32768]{0}', space=vmem, size = 0x8000, scoped, tag = 'input window, operand 2, single buffered']
    #allocation8 [shape = 'u8[32768]{0}', space=vmem, size = 0x8000, scoped, tag = 'input window, operand 3, single buffered']
    #allocation9 [shape = 's32[1]{0}', space=sflag, size = 0x4, scoped, tag = 'scoped memory for tpu_custom_call.1']
    #allocation10 [shape = 'u8[4096]{0}', space=vmem, size = 0x1000, scoped, tag = 'input window, operand 4, single buffered']
    #allocation11 [shape = 'u8[8192]{0}', space=vmem, size = 0x2000, scoped, tag = 'output window, operand 0, single buffered']
    %11 = vsyncpa [#allocation3], 0
    %12 = vsyncpa [#allocation6], 0
    %13 = vsyncpa [#allocation9], 0
    %14 = vsyncpa [#allocation4], 0
    // Predicated region
    $region2: #{tpu_custom_call.1} parent=1 // pred_check
      _
    $region3: #{tpu_custom_call.1} parent=1 // pred_check_branch
      %16 = sbr.rel (0) target = $region5
    $region4: #{tpu_custom_call.1} parent=1 // pred_region
      %18 = vsyncadd [#allocation3], 0
      %s19 = sshll.u32 %s0, 4
      %s20 = int_to_ptr.hbm [resolvable:$true] %s19
      %s21 = sshll.u32 [#allocation2], 4
      %s22 = int_to_ptr.vmem [resolvable:$true] %s21
      %27 = dma.hbm_to_vmem [thread:$0]  %s20, 256, %s22, [#allocation3], 128, 128, 8
    $region5: #{tpu_custom_call.1} parent=1 // pred_fallthru
      _
    // Predicated region
    $region6: #{tpu_custom_call.1} parent=1 // pred_check
      _
    $region7: #{tpu_custom_call.1} parent=1 // pred_check_branch
      %29 = sbr.rel (0) target = $region9
    $region8: #{tpu_custom_call.1} parent=1 // pred_region
      %31 = vsyncadd [#allocation6], 0
      %s32 = sshll.u32 %s1, 4
      %s33 = int_to_ptr.hbm [resolvable:$true] %s32
      %s34 = sshll.u32 [#allocation5], 4
      %s35 = int_to_ptr.vmem [resolvable:$true] %s34
      %40 = dma.hbm_to_vmem [thread:$0]  %s33, 1024, %s35, [#allocation6], 64, 64, 4
    $region9: #{tpu_custom_call.1} parent=1 // pred_fallthru
      _
    // Predicated region
    $region10: #{tpu_custom_call.1} parent=1 // pred_check
      _
    $region11: #{tpu_custom_call.1} parent=1 // pred_check_branch
      %42 = sbr.rel (0) target = $region13
    $region12: #{tpu_custom_call.1} parent=1 // pred_region
      %44 = vsyncadd [#allocation6], 0
      %s45 = sshll.u32 %s2, 4
      %s46 = int_to_ptr.hbm [resolvable:$true] %s45
      %s47 = sshll.u32 [#allocation7], 4
      %s48 = int_to_ptr.vmem [resolvable:$true] %s47
      %53 = dma.hbm_to_vmem [thread:$0]  %s46, 1024, %s48, [#allocation6], 64, 64, 4
    $region13: #{tpu_custom_call.1} parent=1 // pred_fallthru
      _
    // Predicated region
    $region14: #{tpu_custom_call.1} parent=1 // pred_check
      _
    $region15: #{tpu_custom_call.1} parent=1 // pred_check_branch
      %55 = sbr.rel (0) target = $region17
    $region16: #{tpu_custom_call.1} parent=1 // pred_region
      %57 = vsyncadd [#allocation9], 0
      %s58 = sshll.u32 %s3, 4
      %s59 = int_to_ptr.hbm [resolvable:$true] %s58
      %s60 = sshll.u32 [#allocation8], 4
      %s61 = int_to_ptr.vmem [resolvable:$true] %s60
      %66 = dma.hbm_to_vmem [thread:$0]  %s59, 1024, %s61, [#allocation9], 64, 64, 4
    $region17: #{tpu_custom_call.1} parent=1 // pred_fallthru
      _
    // Predicated region
    $region18: #{tpu_custom_call.1} parent=1 // pred_check
      _
    $region19: #{tpu_custom_call.1} parent=1 // pred_check_branch
      %68 = sbr.rel (0) target = $region21
    $region20: #{tpu_custom_call.1} parent=1 // pred_region
      %70 = vsyncadd [#allocation9], 0
      %s72 = sshll.u32 %s4, 4
      %s73 = int_to_ptr.hbm [resolvable:$true] %s72
      %s74 = sshll.u32 [#allocation10], 4
      %s75 = int_to_ptr.vmem [resolvable:$true] %s74
      %77 = dma.hbm_to_vmem [thread:$0]  %s73, 128, %s75, [#allocation9]
    $region21: #{tpu_custom_call.1} parent=1 // pred_fallthru
      _
    // Predicated region
    $region22: #{tpu_custom_call.1} parent=1 // pred_check
      _
    $region23: #{tpu_custom_call.1} parent=1 // pred_check_branch
      %79 = sbr.rel (0) target = $region25
    $region24: #{tpu_custom_call.1} parent=1 // pred_region
      _
    $region25: #{tpu_custom_call.1} parent=1 // pred_fallthru
      _
    // Predicated region
    $region26: #{tpu_custom_call.1} parent=1 // pred_check
      _
    $region27: #{tpu_custom_call.1} parent=1 // pred_check_branch
      %81 = sbr.rel (0) target = $region29
    $region28: #{tpu_custom_call.1} parent=1 // pred_region
      %83 = dma.done [#allocation3], 256
    $region29: #{tpu_custom_call.1} parent=1 // pred_fallthru
      _
    // Predicated region
    $region30: #{tpu_custom_call.1} parent=1 // pred_check
      _
    $region31: #{tpu_custom_call.1} parent=1 // pred_check_branch
      %85 = sbr.rel (0) target = $region33
    $region32: #{tpu_custom_call.1} parent=1 // pred_region
      %87 = dma.done [#allocation6], 1024
    $region33: #{tpu_custom_call.1} parent=1 // pred_fallthru
      _
    // Predicated region
    $region34: #{tpu_custom_call.1} parent=1 // pred_check
      _
    $region35: #{tpu_custom_call.1} parent=1 // pred_check_branch
      %89 = sbr.rel (0) target = $region37
    $region36: #{tpu_custom_call.1} parent=1 // pred_region
      %91 = dma.done [#allocation6], 1024
    $region37: #{tpu_custom_call.1} parent=1 // pred_fallthru
      _
    // Predicated region
    $region38: #{tpu_custom_call.1} parent=1 // pred_check
      _
    $region39: #{tpu_custom_call.1} parent=1 // pred_check_branch
      %93 = sbr.rel (0) target = $region41
    $region40: #{tpu_custom_call.1} parent=1 // pred_region
      %95 = dma.done [#allocation9], 1024
    $region41: #{tpu_custom_call.1} parent=1 // pred_fallthru
      _
    // Predicated region
    $region42: #{tpu_custom_call.1} parent=1 // pred_check
      _
    $region43: #{tpu_custom_call.1} parent=1 // pred_check_branch
      %97 = sbr.rel (0) target = $region45
    $region44: #{tpu_custom_call.1} parent=1 // pred_region
      %99 = dma.done [#allocation9], 128
    $region45: #{tpu_custom_call.1} parent=1 // pred_fallthru
      _
    %v100 = vld [vmem:[#allocation2] sm:$0xff]
    %v101 = vld [vmem:[#allocation2 + $0x8] sm:$0xff]
    %v102 = vpack.c.bf16 %v101, %v100
    %v103 = vld [vmem:[#allocation10] sm:$0x1]
    %v104 = vld [vmem:[#allocation10 + $0x1] sm:$0x1]
    %v105 = vld [vmem:[#allocation10 + $0x2] sm:$0x1]
    %v106 = vld [vmem:[#allocation10 + $0x3] sm:$0x1]
    %v107 = vld [vmem:[#allocation10 + $0x4] sm:$0x1]
    %v108 = vld [vmem:[#allocation10 + $0x5] sm:$0x1]
    %v109 = vld [vmem:[#allocation5] sm:$0xf]
    %v110 = vld [vmem:[#allocation5 + $0x4] sm:$0xf]
    %v111 = vld [vmem:[#allocation5 + $0x8] sm:$0xf]
    %v112 = vld [vmem:[#allocation5 + $0xc] sm:$0xf]
    %v113 = vld [vmem:[#allocation5 + $0x10] sm:$0xf]
    %v114 = vld [vmem:[#allocation5 + $0x14] sm:$0xf]
    %v115 = vld [vmem:[#allocation5 + $0x18] sm:$0xf]
    %v116 = vld [vmem:[#allocation5 + $0x1c] sm:$0xf]
    %v117 = vld [vmem:[#allocation5 + $0x20] sm:$0xf]
    %v118 = vld [vmem:[#allocation5 + $0x24] sm:$0xf]
    %v119 = vld [vmem:[#allocation5 + $0x28] sm:$0xf]
    %v120 = vld [vmem:[#allocation5 + $0x2c] sm:$0xf]
    %v121 = vld [vmem:[#allocation5 + $0x30] sm:$0xf]
    %v122 = vld [vmem:[#allocation5 + $0x34] sm:$0xf]
    %v123 = vld [vmem:[#allocation5 + $0x38] sm:$0xf]
    %v124 = vld [vmem:[#allocation5 + $0x3c] sm:$0xf]
    %v125 = vperm.slane %v103, 0
    %v142 = vunpack.c.l.b16 %v109
    %v143 = vunpack.c.l.b16 %v110
    %v144 = vunpack.c.l.b16 %v111
    %v145 = vunpack.c.l.b16 %v112
    %v146 = vunpack.c.l.b16 %v113
    %v147 = vunpack.c.l.b16 %v114
    %v148 = vunpack.c.l.b16 %v115
    %v149 = vunpack.c.l.b16 %v116
    %v150 = vunpack.c.l.b16 %v117
    %v151 = vunpack.c.l.b16 %v118
    %v152 = vunpack.c.l.b16 %v119
    %v153 = vunpack.c.l.b16 %v120
    %v154 = vunpack.c.l.b16 %v121
    %v155 = vunpack.c.l.b16 %v122
    %v156 = vunpack.c.l.b16 %v123
    %v157 = vunpack.c.l.b16 %v124
    %v158 = vpack.c.b16 %v143, %v142
    %v159 = vpack.c.b16 %v145, %v144
    %v160 = vpack.c.b16 %v147, %v146
    %v161 = vpack.c.b16 %v149, %v148
    %v162 = vpack.c.b16 %v151, %v150
    %v163 = vpack.c.b16 %v153, %v152
    %v164 = vpack.c.b16 %v155, %v154
    %v165 = vpack.c.b16 %v157, %v156
    %174 = vmatpush.bf16.msra.mxu0 %v165
    %175 = vmatpush.bf16.msra.mxu0 %v164
    %176 = vmatpush.bf16.msra.mxu0 %v163
    %177 = vmatpush.bf16.msra.mxu0 %v162
    %178 = vmatpush.bf16.msra.mxu0 %v161
    %179 = vmatpush.bf16.msra.mxu0 %v160
    %180 = vmatpush.bf16.msra.mxu0 %v159
    %181 = vmatpush.bf16.msra.mxu0 %v158
    %182 = vmatmul.bf16.gmra.mxu0 %v102
    %v183 = vpop.f32.mrf.mxu0
    %v184 = vadd.f32 %v125, %v183
    %v185 = vpop.f32.mrf.mxu0
    %v186 = vadd.f32 %v125, %v185
    %187 = vdwg.mxu0
    %188 = vadd.xlane.f32.xlu0 %v184
    %v189 = vpop.xlane.xlu0 %188
    %190 = vadd.xlane.f32.xlu0 %v186
    %v191 = vpop.xlane.xlu0 %190
    %v192 = vmul.f32 %v189, 0.025
    %v193 = vmul.f32 %v191, 0.025
    %v194 = vmul.f32 %v184, %v184
    %v195 = vmul.f32 %v186, %v186
    %196 = vadd.xlane.f32.xlu0 %v194
    %v197 = vpop.xlane.xlu0 %196
    %198 = vadd.xlane.f32.xlu0 %v195
    %v199 = vpop.xlane.xlu0 %198
    %v200 = vmul.f32 %v197, 0.025
    %v201 = vmul.f32 %v199, 0.025
    %v202 = vmul.f32 %v192, %v192
    %v203 = vmul.f32 %v193, %v193
    %v204 = vsub.f32 %v200, %v202
    %v205 = vsub.f32 %v201, %v203
    %v206 = vmax.f32 %v204, 0.0
    %v207 = vmax.f32 %v205, 0.0
    %v208 = vsub.f32 %v184, %v192
    %v209 = vsub.f32 %v186, %v193
    %v210 = vadd.f32 %v206, 1e-05
    %v211 = vadd.f32 %v207, 1e-05
    %v212 = vrsqrt.pop %v210
    %v213 = vmul.f32 %v212, %v210
    %v214 = vmul.f32 %v213, %v212
    %v215 = vmul.f32 0.5, %v214
    %v216 = vsub.f32 1.5, %v215
    %v217 = vmul.f32 %v212, %v216
    %vm218 = vweird.f32 %v210
    %vm219 = vweird.f32 %v212
    %vm220 = vmor %vm218, %vm219
    %v221 = vsel %vm220, %v212, %v217
    %v222 = vrsqrt.pop %v211
    %v223 = vmul.f32 %v222, %v211
    %v224 = vmul.f32 %v223, %v222
    %v225 = vmul.f32 0.5, %v224
    %v226 = vsub.f32 1.5, %v225
    %v227 = vmul.f32 %v222, %v226
    %vm228 = vweird.f32 %v211
    %vm229 = vweird.f32 %v222
    %vm230 = vmor %vm228, %vm229
    %v231 = vsel %vm230, %v222, %v227
    %v232 = vmul.f32 %v208, %v221
    %v233 = vmul.f32 %v209, %v231
    %v234 = vperm.slane %v104, 0
    %v235 = vmul.f32 %v232, %v234
    %v236 = vmul.f32 %v233, %v234
    %v237 = vperm.slane %v105, 0
    %v238 = vadd.f32 %v235, %v237
    %v239 = vadd.f32 %v236, %v237
    %v240 = vsub.f32 0.0, %v238
    %v241 = vsub.f32 0.0, %v239
    %v242 = vmul.f32 %v240, 1.442695
    %v243 = vpow.pop %v242
    %v244 = vmul.f32 %v241, 1.442695
    %v245 = vpow.pop %v244
    %v246 = vadd.f32 %v243, 1.0
    %v247 = vadd.f32 %v245, 1.0
    %v248 = vrcp.pop %v246
    %v249 = vrcp.pop %v247
    %v250 = vmul.f32 %v238, %v248
    %v251 = vmul.f32 %v239, %v249
    %v252 = vpack.c.bf16 %v251, %v250
    %v253 = vld [vmem:[#allocation7] sm:$0xf]
    %v254 = vld [vmem:[#allocation7 + $0x4] sm:$0xf]
    %v255 = vld [vmem:[#allocation7 + $0x8] sm:$0xf]
    %v256 = vld [vmem:[#allocation7 + $0xc] sm:$0xf]
    %v257 = vld [vmem:[#allocation7 + $0x10] sm:$0xf]
    %v258 = vld [vmem:[#allocation7 + $0x14] sm:$0xf]
    %v259 = vld [vmem:[#allocation7 + $0x18] sm:$0xf]
    %v260 = vld [vmem:[#allocation7 + $0x1c] sm:$0xf]
    %v261 = vld [vmem:[#allocation7 + $0x20] sm:$0xf]
    %v262 = vld [vmem:[#allocation7 + $0x24] sm:$0xf]
    %v263 = vld [vmem:[#allocation7 + $0x28] sm:$0xf]
    %v264 = vld [vmem:[#allocation7 + $0x2c] sm:$0xf]
    %v265 = vld [vmem:[#allocation7 + $0x30] sm:$0xf]
    %v266 = vld [vmem:[#allocation7 + $0x34] sm:$0xf]
    %v267 = vld [vmem:[#allocation7 + $0x38] sm:$0xf]
    %v268 = vld [vmem:[#allocation7 + $0x3c] sm:$0xf]
    %v269 = vperm.slane %v106, 0
    %v286 = vunpack.c.l.b16 %v253
    %v287 = vunpack.c.l.b16 %v254
    %v288 = vunpack.c.l.b16 %v255
    %v289 = vunpack.c.l.b16 %v256
    %v290 = vunpack.c.l.b16 %v257
    %v291 = vunpack.c.l.b16 %v258
    %v292 = vunpack.c.l.b16 %v259
    %v293 = vunpack.c.l.b16 %v260
    %v294 = vunpack.c.l.b16 %v261
    %v295 = vunpack.c.l.b16 %v262
    %v296 = vunpack.c.l.b16 %v263
    %v297 = vunpack.c.l.b16 %v264
    %v298 = vunpack.c.l.b16 %v265
    %v299 = vunpack.c.l.b16 %v266
    %v300 = vunpack.c.l.b16 %v267
    %v301 = vunpack.c.l.b16 %v268
    %v302 = vpack.c.b16 %v287, %v286
    %v303 = vpack.c.b16 %v289, %v288
    %v304 = vpack.c.b16 %v291, %v290
    %v305 = vpack.c.b16 %v293, %v292
    %v306 = vpack.c.b16 %v295, %v294
    %v307 = vpack.c.b16 %v297, %v296
    %v308 = vpack.c.b16 %v299, %v298
    %v309 = vpack.c.b16 %v301, %v300
    %318 = vmatpush.bf16.msra.mxu0 %v309
    %319 = vmatpush.bf16.msra.mxu0 %v308
    %320 = vmatpush.bf16.msra.mxu0 %v307
    %321 = vmatpush.bf16.msra.mxu0 %v306
    %322 = vmatpush.bf16.msra.mxu0 %v305
    %323 = vmatpush.bf16.msra.mxu0 %v304
    %324 = vmatpush.bf16.msra.mxu0 %v303
    %325 = vmatpush.bf16.msra.mxu0 %v302
    %326 = vmatmul.bf16.gmra.mxu0 %v252
    %v327 = vpop.f32.mrf.mxu0
    %v328 = vadd.f32 %v269, %v327
    %v329 = vpop.f32.mrf.mxu0
    %v330 = vadd.f32 %v269, %v329
    %331 = vdwg.mxu0
    %332 = vadd.xlane.f32.xlu0 %v328
    %v333 = vpop.xlane.xlu0 %332
    %334 = vadd.xlane.f32.xlu0 %v330
    %v335 = vpop.xlane.xlu0 %334
    %v336 = vmul.f32 %v333, 0.025
    %v337 = vmul.f32 %v335, 0.025
    %v338 = vmul.f32 %v328, %v328
    %v339 = vmul.f32 %v330, %v330
    %340 = vadd.xlane.f32.xlu0 %v338
    %v341 = vpop.xlane.xlu0 %340
    %342 = vadd.xlane.f32.xlu0 %v339
    %v343 = vpop.xlane.xlu0 %342
    %v344 = vmul.f32 %v341, 0.025
    %v345 = vmul.f32 %v343, 0.025
    %v346 = vmul.f32 %v336, %v336
    %v347 = vmul.f32 %v337, %v337
    %v348 = vsub.f32 %v344, %v346
    %v349 = vsub.f32 %v345, %v347
    %v350 = vmax.f32 %v348, 0.0
    %v351 = vmax.f32 %v349, 0.0
    %v352 = vsub.f32 %v328, %v336
    %v353 = vsub.f32 %v330, %v337
    %v354 = vadd.f32 %v350, 1e-05
    %v355 = vadd.f32 %v351, 1e-05
    %v356 = vrsqrt.pop %v354
    %v357 = vmul.f32 %v356, %v354
    %v358 = vmul.f32 %v357, %v356
    %v359 = vmul.f32 0.5, %v358
    %v360 = vsub.f32 1.5, %v359
    %v361 = vmul.f32 %v356, %v360
    %vm362 = vweird.f32 %v354
    %vm363 = vweird.f32 %v356
    %vm364 = vmor %vm362, %vm363
    %v365 = vsel %vm364, %v356, %v361
    %v366 = vrsqrt.pop %v355
    %v367 = vmul.f32 %v366, %v355
    %v368 = vmul.f32 %v367, %v366
    %v369 = vmul.f32 0.5, %v368
    %v370 = vsub.f32 1.5, %v369
    %v371 = vmul.f32 %v366, %v370
    %vm372 = vweird.f32 %v355
    %vm373 = vweird.f32 %v366
    %vm374 = vmor %vm372, %vm373
    %v375 = vsel %vm374, %v366, %v371
    %v376 = vmul.f32 %v352, %v365
    %v377 = vmul.f32 %v353, %v375
    %v378 = vperm.slane %v107, 0
    %v379 = vmul.f32 %v376, %v378
    %v380 = vmul.f32 %v377, %v378
    %v381 = vperm.slane %v108, 0
    %v382 = vadd.f32 %v379, %v381
    %v383 = vadd.f32 %v380, %v381
    %v384 = vsub.f32 0.0, %v382
    %v385 = vsub.f32 0.0, %v383
    %v386 = vmul.f32 %v384, 1.442695
    %v387 = vpow.pop %v386
    %v388 = vmul.f32 %v385, 1.442695
    %v389 = vpow.pop %v388
    %v390 = vadd.f32 %v387, 1.0
    %v391 = vadd.f32 %v389, 1.0
    %v392 = vrcp.pop %v390
    %v393 = vrcp.pop %v391
    %v394 = vmul.f32 %v382, %v392
    %v395 = vmul.f32 %v383, %v393
    %v396 = vpack.c.bf16 %v395, %v394
    %v397 = vld [vmem:[#allocation8] sm:$0xf]
    %v398 = vld [vmem:[#allocation8 + $0x4] sm:$0xf]
    %v399 = vld [vmem:[#allocation8 + $0x8] sm:$0xf]
    %v400 = vld [vmem:[#allocation8 + $0xc] sm:$0xf]
    %v401 = vld [vmem:[#allocation8 + $0x10] sm:$0xf]
    %v402 = vld [vmem:[#allocation8 + $0x14] sm:$0xf]
    %v403 = vld [vmem:[#allocation8 + $0x18] sm:$0xf]
    %v404 = vld [vmem:[#allocation8 + $0x1c] sm:$0xf]
    %v405 = vld [vmem:[#allocation8 + $0x20] sm:$0xf]
    %v406 = vld [vmem:[#allocation8 + $0x24] sm:$0xf]
    %v407 = vld [vmem:[#allocation8 + $0x28] sm:$0xf]
    %v408 = vld [vmem:[#allocation8 + $0x2c] sm:$0xf]
    %v409 = vld [vmem:[#allocation8 + $0x30] sm:$0xf]
    %v410 = vld [vmem:[#allocation8 + $0x34] sm:$0xf]
    %v411 = vld [vmem:[#allocation8 + $0x38] sm:$0xf]
    %v412 = vld [vmem:[#allocation8 + $0x3c] sm:$0xf]
    %v413 = vld [vmem:[%s5] sm:$0x1]
    %v415 = vperm.slane %v413, 0
    %v433 = vunpack.c.l.b16 %v397
    %v434 = vunpack.c.l.b16 %v398
    %v435 = vunpack.c.l.b16 %v399
    %v436 = vunpack.c.l.b16 %v400
    %v437 = vunpack.c.l.b16 %v401
    %v438 = vunpack.c.l.b16 %v402
    %v439 = vunpack.c.l.b16 %v403
    %v440 = vunpack.c.l.b16 %v404
    %v441 = vunpack.c.l.b16 %v405
    %v442 = vunpack.c.l.b16 %v406
    %v443 = vunpack.c.l.b16 %v407
    %v444 = vunpack.c.l.b16 %v408
    %v445 = vunpack.c.l.b16 %v409
    %v446 = vunpack.c.l.b16 %v410
    %v447 = vunpack.c.l.b16 %v411
    %v448 = vunpack.c.l.b16 %v412
    %v449 = vpack.c.b16 %v434, %v433
    %v450 = vpack.c.b16 %v436, %v435
    %v451 = vpack.c.b16 %v438, %v437
    %v452 = vpack.c.b16 %v440, %v439
    %v453 = vpack.c.b16 %v442, %v441
    %v454 = vpack.c.b16 %v444, %v443
    %v455 = vpack.c.b16 %v446, %v445
    %v456 = vpack.c.b16 %v448, %v447
    %465 = vmatpush.bf16.msra.mxu0 %v456
    %466 = vmatpush.bf16.msra.mxu0 %v455
    %467 = vmatpush.bf16.msra.mxu0 %v454
    %468 = vmatpush.bf16.msra.mxu0 %v453
    %469 = vmatpush.bf16.msra.mxu0 %v452
    %470 = vmatpush.bf16.msra.mxu0 %v451
    %471 = vmatpush.bf16.msra.mxu0 %v450
    %472 = vmatpush.bf16.msra.mxu0 %v449
    %473 = vmatmul.bf16.gmra.mxu0 %v396
    %v474 = vpop.f32.mrf.mxu0
    %v475 = vadd.f32 %v415, %v474
    %v476 = vpop.f32.mrf.mxu0
    %v477 = vadd.f32 %v415, %v476
    %478 = vdwg.mxu0
    %479 = vst [vmem:[#allocation11] sm:$0xff] %v475
    %480 = vst [vmem:[#allocation11 + $0x8] sm:$0xff] %v477
    // Predicated region
    $region46: #{tpu_custom_call.1} parent=1 // pred_check
      _
    $region47: #{tpu_custom_call.1} parent=1 // pred_check_branch
      %482 = sbr.rel (0) target = $region49
    $region48: #{tpu_custom_call.1} parent=1 // pred_region
      %484 = vsyncadd [#allocation4], 0
      %s485 = sshll.u32 [#allocation11], 4
      %s486 = int_to_ptr.vmem [resolvable:$true] %s485
      %s487 = sshll.u32 %s6, 4
      %s488 = int_to_ptr.hbm [resolvable:$true] %s487
      %493 = dma.vmem_to_hbm [thread:$0]  %s486, 256, %s488, [#allocation4], 128, 128, 8
    $region49: #{tpu_custom_call.1} parent=1 // pred_fallthru
      _
    // Predicated region
    $region50: #{tpu_custom_call.1} parent=1 // pred_check
      _
    $region51: #{tpu_custom_call.1} parent=1 // pred_check_branch
      %495 = sbr.rel (0) target = $region53
    $region52: #{tpu_custom_call.1} parent=1 // pred_region
      %497 = dma.done [#allocation4], 256
    $region53: #{tpu_custom_call.1} parent=1 // pred_fallthru
      _
    %498 = vsyncpa [#allocation3], 1
    %499 = vsyncpa [#allocation6], 1
    %500 = vsyncpa [#allocation9], 1
    %501 = vsyncpa [#allocation4], 1

</llo_original>
